<compile_context>
chip_gen: v6e
topology: v6e:2x2x1
jax: 0.10.0
libtpu: 0.0.40
codegen_flags: <defaults>
</compile_context>

<pallas_src>
import functools

import jax
import jax.numpy as jnp
import numpy as np
from jax import lax
from jax.experimental import pallas as pl
from jax.experimental.pallas import tpu as pltpu


# -----------------------------------------------------------------------------
# pltpu.roll direction probe (tiny one-off kernel, cached).
# np.roll convention means roll(x, s)[i] == x[(i - s) % N] (content moves toward
# higher lane indices).  The bitonic network needs to know which roll yields the
# +j / -j neighbour, so measure it once instead of assuming.
# -----------------------------------------------------------------------------
@functools.lru_cache(maxsize=None)
def _roll_shifts_to_higher_lanes() -> bool:
    def probe(x_ref, o_ref):
        o_ref[...] = pltpu.roll(x_ref[...], shift=1, axis=1)

    x = jnp.tile(lax.iota(jnp.float32, 128)[None, :], (8, 1))
    y = pl.pallas_call(
        probe, out_shape=jax.ShapeDtypeStruct((8, 128), jnp.float32))(x)
    return bool(np.asarray(y)[0, 0] == 127.0)


# -----------------------------------------------------------------------------
# Pallas kernel: per grid step, for Bt batch elements, compute
#   s[b, p] = sum_n | sort(xproj)[b, p, n] - sort(yproj)[b, p, n] |^2
# TODO(synk): degree is fixed to the 2.0 default used by VSW.forward.
# -----------------------------------------------------------------------------
def _vsw_sums_kernel(xy_ref, proj_ref, out_ref, *,
                     Bt, P, N, N_pad, HP_pad, roll_to_higher):
    # xy_ref   : [1, Bt*8, 2*N_pad]  x|y lane-concatenated, point-dim on sublanes
    # proj_ref : [1, Bt*P, Bt*8]     block-diagonal projections
    # out_ref  : [1, HP_pad, 128]    lane-broadcast per-(batch, projection) sums
    HP = Bt * P
    R = 2 * HP

    # --- single fused MXU matmul: block-diag proj @ [x | y] -> [HP, 2*N_pad].
    pr = jnp.dot(proj_ref[0], xy_ref[0], preferred_element_type=jnp.float32)
    # Lane halves (x-proj, y-proj) stacked on sublanes: rows [0:HP] = x, [HP:R] = y.
    v = jnp.concatenate([pr[:, :N_pad], pr[:, N_pad:]], axis=0)      # [R, N_pad]

    lane = lax.broadcasted_iota(jnp.int32, (R, N_pad), 1)
    if N_pad != N:
        # Padded lanes get the same huge sentinel in the x- and y-rows: they
        # sort to the tail of every row and contribute exactly 0 to the diff.
        v = jnp.where(lane < N, v, jnp.float32(1e30))

    # --- hoisted stage masks (computed once per grid step, NOT per stage).
    stage_list = []
    k = 2
    while k <= N_pad:
        j = k // 2
        while j >= 1:
            stage_list.append((k, j))
            j //= 2
        k *= 2
    j_vals = sorted({j for _, j in stage_list})
    k_vals = sorted({k for k, _ in stage_list if k < N_pad})
    is_lower = {j: (lane & j) == 0 for j in j_vals}    # partner sits at lane + j
    asc = {k: (lane & k) == 0 for k in k_vals}         # ascending sub-block of size k

    # --- bitonic sort of every row along the lane axis (ascending), fully
    # unrolled at trace time: 2 XLU rolls + ~5 VPU ops per vreg per stage.
    for k, j in stage_list:
        up_shift = (N_pad - j) if roll_to_higher else j
        dn_shift = j if roll_to_higher else (N_pad - j)
        up = pltpu.roll(v, shift=up_shift, axis=1)     # v[(i + j) % N_pad]
        dn = pltpu.roll(v, shift=dn_shift, axis=1)     # v[(i - j) % N_pad]
        if k < N_pad:
            take_max = jnp.logical_xor(asc[k], is_lower[j])
        else:
            take_max = jnp.logical_not(is_lower[j])    # final merge: all ascending
        partner = jnp.where(is_lower[j], up, dn)
        v = jnp.where(take_max,
                      jnp.maximum(v, partner),
                      jnp.minimum(v, partner))

    # --- p-power reduction (degree == 2: |d|^degree == d*d) on the MXU.
    # (d*d) @ ones[N_pad, 128] yields the lane-broadcast [HP, 128] tile directly,
    # avoiding an XLU cross-lane reduce + VPU broadcast before the store.
    d = v[:HP, :] - v[HP:, :]                          # sort(xproj) - sort(yproj)
    s = jnp.dot(d * d, jnp.ones((N_pad, 128), jnp.float32),
                preferred_element_type=jnp.float32)    # [HP, 128]
    if HP_pad != HP:
        s = jnp.concatenate(
            [s, jnp.zeros((HP_pad - HP, 128), jnp.float32)], axis=0)
    out_ref[0] = s                                     # lane-dense unmasked store


def _choose_grid(B, P, max_rows=128):
    """Per-step batch Bt and grid size nb.

    Largest Bt keeping the sorted block 2*Bt*P <= max_rows rows, but with at
    least 2 grid steps whenever B >= 2 (so both v7x TensorCores get work).
    B is padded up to nb*Bt in the wrapper -- no divisibility requirement.
    """
    bt = max(1, max_rows // (2 * P))
    bt = min(bt, B)
    nb = -(-B // bt)
    if nb == 1 and B >= 2:
        nb = 2
        bt = -(-B // nb)
        nb = -(-B // bt)
    return bt, nb


@functools.partial(jax.jit, static_argnums=(3,))
def _sw_p2_sums_jit(x, y, projections, roll_to_higher):
    """x, y: [B, N, D]; projections: [B, P, D] ->
    s: [B, P] with s[b, p] = sum_n |sort(xproj)[b,p] - sort(yproj)[b,p]|^2."""
    B, N, D = x.shape
    P = projections.shape[1]
    Dp = 8
    assert D <= Dp, "point dim is zero-padded to 8 sublanes"

    N_pad = max(128, 1 << (N - 1).bit_length())    # lane width; power of 2 for bitonic
    Bt, nb = _choose_grid(B, P)
    B_pad = Bt * nb
    HP = Bt * P
    HP_pad = ((HP + 7) // 8) * 8

    def prep_points(a):
        a = a.astype(jnp.float32)
        a = jnp.pad(a, ((0, B_pad - B), (0, 0), (0, Dp - D)))    # pad batch & point dim
        a = jnp.transpose(a, (0, 2, 1))                          # [B_pad, Dp, N]
        a = jnp.pad(a, ((0, 0), (0, 0), (0, N_pad - N)))         # pad points
        return a.reshape(nb, Bt * Dp, N_pad)

    x_blk = prep_points(x)
    y_blk = prep_points(y)
    xy = jnp.concatenate([x_blk, y_blk], axis=-1)                # [nb, Bt*Dp, 2*N_pad]

    proj = projections.astype(jnp.float32)
    proj = jnp.pad(proj, ((0, B_pad - B), (0, 0), (0, Dp - D)))  # [B_pad, P, Dp]
    proj = proj.reshape(nb, Bt, P, Dp)
    eye = jnp.eye(Bt, dtype=jnp.float32)
    # Block-diagonal projections: one MXU dot per grid step instead of 2*Bt.
    proj_bd = jnp.einsum('gbpd,bc->gbpcd', proj, eye).reshape(nb, Bt * P, Bt * Dp)

    kernel = functools.partial(_vsw_sums_kernel, Bt=Bt, P=P, N=N, N_pad=N_pad,
                               HP_pad=HP_pad, roll_to_higher=roll_to_higher)
    out = pl.pallas_call(
        kernel,
        out_shape=jax.ShapeDtypeStruct((nb, HP_pad, 128), jnp.float32),
        grid_spec=pltpu.PrefetchScalarGridSpec(
            num_scalar_prefetch=0,
            grid=(nb,),
            in_specs=[pl.BlockSpec((1, Bt * Dp, 2 * N_pad), lambda g: (g, 0, 0)),
                      pl.BlockSpec((1, Bt * P, Bt * Dp), lambda g: (g, 0, 0))],
            out_specs=pl.BlockSpec((1, HP_pad, 128), lambda g: (g, 0, 0))),
        # Batch axis is embarrassingly parallel -> megacore-shardable on v7x.
        compiler_params=pltpu.CompilerParams(dimension_semantics=("parallel",)),
    )(xy, proj_bd)
    return out[:, :HP, 0].reshape(B_pad, P)[:B]


def _sw_p2_sums(x, y, projections):
    return _sw_p2_sums_jit(x, y, projections, _roll_shifts_to_higher_lanes())


# -----------------------------------------------------------------------------
# Pure-JAX reference (used for the correctness check, the inner max-SW gradient
# loop, and the custom_vjp backward).
# -----------------------------------------------------------------------------
def sw_moments_ref(x, y, projections, degree=2.0):
    xproj = jnp.einsum('bnd,bpd->bpn', x, projections, precision=lax.Precision.HIGHEST)
    yproj = jnp.einsum('bnd,bpd->bpn', y, projections, precision=lax.Precision.HIGHEST)
    diff = jnp.sort(xproj, axis=2) - jnp.sort(yproj, axis=2)
    s = jnp.sum(jnp.abs(diff) ** degree, axis=2)
    first = jnp.mean(s, axis=1) ** (1.0 / degree)
    second = jnp.mean(s ** 2, axis=1)
    return first, second


# -----------------------------------------------------------------------------
# compute_practical_moments_sw_with_predefined_projections (degree=2):
# Pallas forward + pure-JAX backward via custom_vjp.
# -----------------------------------------------------------------------------
def _sw_moments_primal(x, y, projections):
    s = _sw_p2_sums(x, y, projections)                 # [B, P]
    first = jnp.sqrt(jnp.mean(s, axis=1))              # mean(.)^(1/degree), degree=2
    second = jnp.mean(s * s, axis=1)
    return first, second


@jax.custom_vjp
def sw_moments_pallas(x, y, projections):
    return _sw_moments_primal(x, y, projections)


def _sw_moments_fwd(x, y, projections):
    return _sw_moments_primal(x, y, projections), (x, y, projections)


def _sw_moments_bwd(res, cotangents):
    # The Pallas forward has no automatic VJP; recompute the cheap pure-JAX
    # moments for the backward pass instead.
    x, y, projections = res
    _, vjp = jax.vjp(lambda a, b, c: sw_moments_ref(a, b, c, 2.0), x, y, projections)
    return vjp(cotangents)


sw_moments_pallas.defvjp(_sw_moments_fwd, _sw_moments_bwd)


# -----------------------------------------------------------------------------
# Pure-JAX glue (parameter setup, VMF sampling).
# TODO(synk): the VMF rejection sampler and the inner max-SW Adam loop are plain
# JAX (control-flow heavy host-side optimizer state; no Pallas win).
# -----------------------------------------------------------------------------
def minibatch_rand_projections(key, batchsize, dim, num_projections):
    proj = jax.random.normal(key, (batchsize, num_projections, dim), jnp.float32)
    return proj / jnp.sqrt(jnp.sum(proj ** 2, axis=2, keepdims=True))


def proj_onto_unit_sphere(vectors, axis=-1):
    return vectors / jnp.sqrt(jnp.sum(vectors ** 2, axis=axis, keepdims=True))


def _vmf_sample_w(key, kappa, num_samples, D, n_attempts=64):
    # Wood's rejection sampling for the VMF marginal along the mean direction.
    dm1 = float(D - 1)
    sq = jnp.sqrt(4.0 * kappa ** 2 + dm1 ** 2)
    b = (-2.0 * kappa + sq) / dm1
    a = (dm1 + 2.0 * kappa + sq) / 4.0
    d = 4.0 * a * b / (1.0 + b) - dm1 * jnp.log(dm1)
    B = kappa.shape[0]
    k1, k2 = jax.random.split(key)
    eps = jax.random.beta(k1, dm1 / 2.0, dm1 / 2.0, (n_attempts, num_samples, B, 1))
    u = jax.random.uniform(k2, (n_attempts, num_samples, B, 1), minval=1e-10, maxval=1.0)
    w_cand = (1.0 - (1.0 + b) * eps) / (1.0 - (1.0 - b) * eps)
    t = 2.0 * a * b / (1.0 - (1.0 - b) * eps)
    accept = (dm1 * jnp.log(t) - t + d) >= jnp.log(u)
    idx = jnp.argmax(accept, axis=0)                               # first accepted attempt
    return jnp.take_along_axis(w_cand, idx[None, ...], axis=0)[0]  # [S, B, 1]


def vmf_rsample(key, loc, scale, num_samples):
    """Reparameterized VMF sample; loc: [B, D] (unit), scale: [B, 1] -> [S, B, D]."""
    B, D = loc.shape
    kw, kv = jax.random.split(key)
    w = _vmf_sample_w(kw, scale, num_samples, D)                   # [S, B, 1]
    v = jax.random.normal(kv, (num_samples, B, D - 1), jnp.float32)
    v = v / jnp.linalg.norm(v, axis=-1, keepdims=True)
    z = jnp.concatenate([w, jnp.sqrt(jnp.clip(1.0 - w ** 2, 0.0)) * v], axis=-1)
    # Householder reflection mapping e1 -> loc (the only loc-differentiable part).
    e1 = jnp.zeros((B, D), jnp.float32).at[:, 0].set(1.0)
    u = e1 - loc
    u = u / (jnp.linalg.norm(u, axis=-1, keepdims=True) + 1e-9)
    z = z - 2.0 * jnp.sum(z * u[None, :, :], axis=-1, keepdims=True) * u[None, :, :]
    return z


# -----------------------------------------------------------------------------
# VSW.forward
# -----------------------------------------------------------------------------
def vsw_forward(x, y, key, *, num_projs, kappa, max_sw_num_iters, max_sw_lr,
                max_sw_optimizer="adam", detach=True, squared_loss=True):
    B, N, D = x.shape
    k_init, key = jax.random.split(key)
    locs = minibatch_rand_projections(k_init, B, D, 1)[:, 0, :]    # [B, D], unit
    scales = jnp.full((B, 1), kappa, dtype=jnp.float32)

    x_d = lax.stop_gradient(x) if detach else x
    y_d = lax.stop_gradient(y) if detach else y

    def neg_first_moment(locs_, subkey):
        proj = jnp.transpose(vmf_rsample(subkey, locs_, scales, num_projs), (1, 0, 2))
        # Inner max-SW gradients use the pure-JAX moments: the Pallas custom_vjp
        # backward recomputes them anyway, so this is strictly less work.
        first, _ = sw_moments_ref(x_d, y_d, proj)
        return -jnp.mean(first) if squared_loss else -jnp.mean(jnp.sqrt(first))

    m = jnp.zeros_like(locs)
    v = jnp.zeros_like(locs)
    b1, b2, eps = 0.9, 0.999, 1e-8
    for t in range(max_sw_num_iters):
        key, sub = jax.random.split(key)
        g = jax.grad(neg_first_moment)(locs, sub)
        if max_sw_optimizer == "adam":
            m = b1 * m + (1.0 - b1) * g
            v = b2 * v + (1.0 - b2) * g * g
            mhat = m / (1.0 - b1 ** (t + 1))
            vhat = v / (1.0 - b2 ** (t + 1))
            locs = locs - max_sw_lr * mhat / (jnp.sqrt(vhat) + eps)
        elif max_sw_optimizer == "sgd":
            locs = locs - max_sw_lr * g
        else:
            raise Exception("Optimizer has had implementation yet.")
        locs = proj_onto_unit_sphere(locs, axis=1)

    locs = lax.stop_gradient(locs)
    key, sub = jax.random.split(key)
    projections = jnp.transpose(vmf_rsample(sub, locs, scales, num_projs), (1, 0, 2))
    first, _second = sw_moments_pallas(x, y, projections)          # Pallas hot path
    loss = jnp.mean(first, axis=0)
    return {"loss": loss, "loc": locs}


if __name__ == "__main__":
    key = jax.random.PRNGKey(0)
    B, N, D = 2, 128, 3          # batch, points per cloud, point dim
    num_projs = 8

    kx, ky, kf, kchk = jax.random.split(key, 4)
    x = jax.random.normal(kx, (B, N, D), jnp.float32)
    y = jax.random.normal(ky, (B, N, D), jnp.float32)

    # --- independent correctness check of the Pallas moment kernel ---
    proj_chk = minibatch_rand_projections(kchk, B, D, num_projs)
    f_pal, s_pal = sw_moments_pallas(x, y, proj_chk)
    f_ref, s_ref = sw_moments_ref(x, y, proj_chk)
    np.testing.assert_allclose(np.asarray(f_pal), np.asarray(f_ref), rtol=5e-3, atol=5e-3)
    np.testing.assert_allclose(np.asarray(s_pal), np.asarray(s_ref), rtol=5e-3, atol=5e-3)

    # --- correctness check with N not a multiple of the lane width (padding path) ---
    x96, y96 = x[:, :96, :], y[:, :96, :]
    f_p96, s_p96 = sw_moments_pallas(x96, y96, proj_chk)
    f_r96, s_r96 = sw_moments_ref(x96, y96, proj_chk)
    np.testing.assert_allclose(np.asarray(f_p96), np.asarray(f_r96), rtol=5e-3, atol=5e-3)
    np.testing.assert_allclose(np.asarray(s_p96), np.asarray(s_r96), rtol=5e-3, atol=5e-3)

    # --- larger batch exercising the multi-step / batch-padding path ---
    kx2, ky2, kp2 = jax.random.split(kchk, 3)
    x24 = jax.random.normal(kx2, (3, N, D), jnp.float32)
    y24 = jax.random.normal(ky2, (3, N, D), jnp.float32)
    p24 = minibatch_rand_projections(kp2, 3, D, num_projs)
    f_p3, s_p3 = sw_moments_pallas(x24, y24, p24)
    f_r3, s_r3 = sw_moments_ref(x24, y24, p24)
    np.testing.assert_allclose(np.asarray(f_p3), np.asarray(f_r3), rtol=5e-3, atol=5e-3)
    np.testing.assert_allclose(np.asarray(s_p3), np.asarray(s_r3), rtol=5e-3, atol=5e-3)

    # --- full VSW forward ---
    out = vsw_forward(x, y, kf, num_projs=num_projs, kappa=50.0,
                      max_sw_num_iters=2, max_sw_lr=1e-2,
                      max_sw_optimizer="adam", detach=True, squared_loss=True)
    loss = jax.block_until_ready(out["loss"])
    loc = jax.block_until_ready(out["loc"])
    assert np.isfinite(np.asarray(loss)).all()
    assert loc.shape == (B, D)

    print("KERNEL_OK")
</pallas_src>

<mosaic_0001>
module attributes {stable_mosaic.version = 11 : i64} {
  func.func @probe(%arg0: memref<8x128xf32, #tpu.memory_space<vmem>>, %arg1: memref<8x128xf32, #tpu.memory_space<vmem>>) attributes {dimension_semantics = [], scalar_prefetch = 0 : i64, scratch_operands = 0 : i64, tpu.core_type = #tpu.core_type<tc>} {
    %c0 = arith.constant 0 : index
    %c0_0 = arith.constant 0 : index
    %0 = vector.load %arg0[%c0, %c0_0] : memref<8x128xf32, #tpu.memory_space<vmem>>, vector<8x128xf32>
    %c1_i32 = arith.constant 1 : i32
    %1 = tpu.dynamic_rotate %0 by %c1_i32 dim 1 : vector<8x128xf32>, i32 -> vector<8x128xf32>
    %c0_1 = arith.constant 0 : index
    %c0_2 = arith.constant 0 : index
    %2 = vector.load %arg1[%c0_1, %c0_2] : memref<8x128xf32, #tpu.memory_space<vmem>>, vector<8x128xf32>
    tpu.vector_store %arg1[%c0_1, %c0_2], %1 {strides = array<i32>} : memref<8x128xf32, #tpu.memory_space<vmem>>, vector<8x128xf32>,
    return
  }
}

</mosaic_0001>

<llo_original>
// kernel: tpu_custom_call.1
$region0: #{tpu_custom_call.1}
  #allocation0 [shape = 'u32[]', space=smem, size = 0x4, offset = 0x4, fixed_abs, tag = 'smem constant byte address 0x4 - core index']
  #allocation1 [shape = 'u32[144,128]{1,0:T(1,128)}', space=vmem, size = 0x12000, scoped, tag = 'internal scratch']
  %s0 = inlined_call_operand.hbm [shape: f32[8,128], index: 0, kind: input, shape index: {}]
  %s1 = inlined_call_operand.hbm [shape: f32[8,128], index: 1, kind: output, shape index: {}]
  %s2 = sld [smem:[#allocation0]]
  $region18: #{tpu_custom_call.1} parent=0
    _
  %s4 = ssub.s32 1, %s2
  %s5 = scalar_select 0, %s4, %s2
  $region1: #{tpu_custom_call.1} parent=0
    #allocation2 [shape = 'u8[4096]{0}', space=vmem, size = 0x1000, scoped, tag = 'input window, operand 0, single buffered']
    #allocation3 [shape = 's32[1]{0}', space=sflag, size = 0x4, scoped, tag = 'scoped memory for tpu_custom_call.1']
    #allocation4 [shape = 's32[1]{0}', space=sflag, size = 0x4, scoped, tag = 'scoped memory for tpu_custom_call.1']
    #allocation5 [shape = 'u8[4096]{0}', space=vmem, size = 0x1000, scoped, tag = 'output window, operand 0, single buffered']
    %6 = vsyncpa [#allocation3], 0
    %7 = vsyncpa [#allocation4], 0
    // Predicated region
    $region2: #{tpu_custom_call.1} parent=1 // pred_check
      _
    $region3: #{tpu_custom_call.1} parent=1 // pred_check_branch
      %9 = sbr.rel (0) target = $region5
    $region4: #{tpu_custom_call.1} parent=1 // pred_region
      %s11 = ssub.s32 128, 128
      %12 = vsyncadd [#allocation3], %s11
      %s14 = sshll.u32 [#allocation2], 4
      %s15 = int_to_ptr.vmem [resolvable:$true] %s14
      %17 = dma.hbm_to_vmem [thread:$0]  %s0, 128, %s15, [#allocation3]
    $region5: #{tpu_custom_call.1} parent=1 // pred_fallthru
      _
    // Predicated region
    $region6: #{tpu_custom_call.1} parent=1 // pred_check
      _
    $region7: #{tpu_custom_call.1} parent=1 // pred_check_branch
      %19 = sbr.rel (0) target = $region9
    $region8: #{tpu_custom_call.1} parent=1 // pred_region
      %20 = dma.done [#allocation3], 128
    $region9: #{tpu_custom_call.1} parent=1 // pred_fallthru
      _
    %v21 = vld [vmem:[#allocation2] sm:$0xff]
    %22 = vrot.lane.b32.xlu0 %v21, 1
    %v23 = vpop.permute.xlu0 %22
    %24 = vst [vmem:[#allocation5] sm:$0xff] %v23
    // Predicated region
    $region10: #{tpu_custom_call.1} parent=1 // pred_check
      _
    $region11: #{tpu_custom_call.1} parent=1 // pred_check_branch
      %26 = sbr.rel (0) target = $region13
    $region12: #{tpu_custom_call.1} parent=1 // pred_region
      %s28 = ssub.s32 128, 128
      %29 = vsyncadd [#allocation4], %s28
      %s31 = sshll.u32 [#allocation5], 4
      %s32 = int_to_ptr.vmem [resolvable:$true] %s31
      %34 = dma.vmem_to_hbm [thread:$0]  %s32, 128, %s1, [#allocation4]
    $region13: #{tpu_custom_call.1} parent=1 // pred_fallthru
      _
    // Predicated region
    $region14: #{tpu_custom_call.1} parent=1 // pred_check
      _
    $region15: #{tpu_custom_call.1} parent=1 // pred_check_branch
      %36 = sbr.rel (0) target = $region17
    $region16: #{tpu_custom_call.1} parent=1 // pred_region
      %37 = dma.done [#allocation4], 128
    $region17: #{tpu_custom_call.1} parent=1 // pred_fallthru
      _
    %38 = vsyncpa [#allocation3], 1
    %39 = vsyncpa [#allocation4], 1

</llo_original>
